<compile_context>
chip_gen: v7x
topology: tpu7x:2x2x1
jax: 0.10.0
libtpu: 0.0.40
codegen_flags: <defaults>
</compile_context>

<pallas_src>
import functools

import numpy as np
import jax
import jax.numpy as jnp
from jax.experimental import pallas as pl
from jax.experimental.pallas import tpu as pltpu


def _row_affine(c0, c1, c2, X, Y, Z):
    """c0*X + c1*Y + c2*Z with trace-time folding of 0.0 / 1.0 coefficients."""
    terms = []
    for c, V in ((c0, X), (c1, Y), (c2, Z)):
        if c == 0.0:
            continue
        terms.append(V if c == 1.0 else c * V)
    if not terms:
        return jnp.zeros_like(X)
    out = terms[0]
    for t in terms[1:]:
        out = out + t
    return out


def _rep_criterion_kernel(data_ref, out_ref, *, k):
    # data_ref: (8, N_pad) f32 in VMEM, lane-dense over the point index:
    #   row 0 = X, row 1 = Y, row 2 = Z (pad lanes: X=Y=0, Z=1)
    #   row 3 = observed u, row 4 = observed v (pad lanes: cx, cy)
    #   rows 5-7 unused padding to a full (8,128) tile.
    # out_ref:  (1, 1) f32 in SMEM -- clamped scalar loss.
    # k: 9-tuple of Python floats (row-major camera intrinsics), baked in at
    #    trace time; zero/unit entries are folded away.
    X = data_ref[0:1, :]                                   # (1, N_pad)
    Y = data_ref[1:2, :]
    Z = data_ref[2:3, :]
    u_obs = data_ref[3:4, :]
    v_obs = data_ref[4:5, :]

    # pix = K @ [X; Y; Z] as scalar*vector FMAs on the VPU (MXU is not worth
    # an issue + result-FIFO pop for a contraction depth of 3).
    u_h = _row_affine(k[0], k[1], k[2], X, Y, Z)           # F*X + cx*Z
    v_h = _row_affine(k[3], k[4], k[5], X, Y, Z)           # F*Y + cy*Z
    w_h = _row_affine(k[6], k[7], k[8], X, Y, Z)           # Z

    # Exact reciprocal (approx=False is the exact divide/Newton path on the
    # VALU, not the EUP vrcp); one reciprocal + two multiplies.
    inv_w = pl.reciprocal(w_h, approx=False)
    u = u_h * inv_w                                        # pts2d[:, 0]
    v = v_h * inv_w                                        # pts2d[:, 1]

    # Pad lanes project exactly to (cx, cy) and u_obs/v_obs are padded with
    # (cx, cy), so their residuals are exactly 0 -- no lane mask needed.
    per_point = (u - u_obs) ** 2 + (v - v_obs) ** 2        # (1, N_pad)

    total = jnp.sum(per_point)                             # scalar
    out_ref[0, 0] = jnp.clip(total, 0.0, 50.0)


@functools.partial(jax.jit, static_argnames=("k", "n_pad"))
def rep_criterion_pallas(k, img_pts, pts3d, n_pad=128):
    """Pallas implementation of JLNet.rep_criterion. Returns a scalar f32.

    k: 9-tuple of Python floats (row-major K), treated as a static argument.
    """
    n = pts3d.shape[0]                                     # 50 in the reference
    pad = n_pad - n
    cx, cy = float(k[2]), float(k[5])

    # One packed, lane-dense (8, n_pad) buffer: points along the 128-lane axis.
    pts3_t = jnp.asarray(pts3d, jnp.float32).T             # (3, n)
    img_t = jnp.asarray(img_pts, jnp.float32).T            # (2, n)
    pad3 = jnp.concatenate(
        [jnp.zeros((2, pad), jnp.float32), jnp.ones((1, pad), jnp.float32)],
        axis=0)                                            # X=Y=0, Z=1 in dead lanes
    pad_img = jnp.concatenate(
        [jnp.full((1, pad), cx, jnp.float32), jnp.full((1, pad), cy, jnp.float32)],
        axis=0)                                            # exact projection of pad pt
    packed = jnp.concatenate(
        [
            jnp.concatenate([pts3_t, pad3], axis=1),       # rows 0-2
            jnp.concatenate([img_t, pad_img], axis=1),     # rows 3-4
            jnp.zeros((3, n_pad), jnp.float32),            # rows 5-7 (tile fill)
        ],
        axis=0)                                            # (8, n_pad)

    kernel = functools.partial(_rep_criterion_kernel, k=k)
    out = pl.pallas_call(
        kernel,
        out_shape=jax.ShapeDtypeStruct((1, 1), jnp.float32),
        in_specs=[
            pl.BlockSpec(memory_space=pltpu.MemorySpace.VMEM),   # packed (8, n_pad)
        ],
        out_specs=pl.BlockSpec(memory_space=pltpu.MemorySpace.SMEM),
    )(packed)
    return out[0, 0]


class JLNetPallas:
    """JAX/Pallas port of JLNet."""

    def __init__(self):
        F = 525
        W = 1024
        H = 308
        K_np = np.array([[F, 0, W // 2], [0, F, H // 2], [0, 0, 1]],
                        dtype=np.float32)
        self.K = jnp.asarray(K_np)
        # Static, hashable form baked into the kernel at trace time.
        self._k_tuple = tuple(float(v) for v in K_np.reshape(-1))

    def forward(self, x):
        # Reference forward() is `pass` -> returns None.  No compute to port.
        return None

    def rep_criterion(self, img_pts, pts3d):
        return rep_criterion_pallas(self._k_tuple, img_pts, pts3d)


def _rep_criterion_reference_f64(K, img_pts, pts3d):
    """Float64 NumPy reference mirroring the PyTorch/numpy code path."""
    K = np.asarray(K, np.float64)
    pts3d = np.asarray(pts3d, np.float64)
    img_pts = np.asarray(img_pts, np.float64)
    pix = pts3d @ K.T                                      # (N, 3)
    pts2d = pix[:, :2] / pix[:, 2:3]                       # (N, 2)
    loss_x = (pts2d[:, 0] - img_pts[:, 0]) ** 2
    loss_y = (pts2d[:, 1] - img_pts[:, 1]) ** 2
    return np.clip(np.sum(loss_x) + np.sum(loss_y), 0.0, 50.0)


if __name__ == "__main__":
    net = JLNetPallas()

    key = jax.random.PRNGKey(0)
    k1, k2, k3 = jax.random.split(key, 3)

    N = 50  # rep_criterion hard-codes a loop over 50 points
    # 3-D points with strictly positive depth Z in [1, 5)
    xy = jax.random.uniform(k1, (N, 2), jnp.float32, minval=-2.0, maxval=2.0)
    z = jax.random.uniform(k2, (N, 1), jnp.float32, minval=1.0, maxval=5.0)
    pts3d = jnp.concatenate([xy, z], axis=1)               # (50, 3)

    # Observed 2-D points = exact projection + small noise so the loss stays
    # below the clamp (exercises the real math path, not just the clamp).
    proj = pts3d @ net.K.T
    proj2d = proj[:, :2] / proj[:, 2:3]
    img_pts = proj2d + 0.3 * jax.random.normal(k3, (N, 2), jnp.float32)  # (50, 2)

    # forward() is a no-op in the reference module
    _ = net.forward(jax.random.normal(key, (2, 4, 16, 16), jnp.float32))

    loss = net.rep_criterion(img_pts, pts3d)
    loss = jax.block_until_ready(loss)

    # Compare against a float64 reference with an f32-appropriate tolerance
    # (the residual u_proj - u_obs with u ~ 500 px leaves ~1e-4 abs noise in
    # any f32 evaluation order).
    loss_ref = _rep_criterion_reference_f64(net.K, img_pts, pts3d)
    np.testing.assert_allclose(np.asarray(loss, np.float64), loss_ref,
                               rtol=1e-3, atol=1e-3)

    print("KERNEL_OK")
</pallas_src>

<mosaic_0001>
module attributes {stable_mosaic.version = 11 : i64} {
  func.func @_rep_criterion_kernel(%arg0: memref<8x128xf32, #tpu.memory_space<vmem>>, %arg1: memref<1x1xf32, #tpu.memory_space<smem>>) attributes {dimension_semantics = [], scalar_prefetch = 0 : i64, scratch_operands = 0 : i64, tpu.core_type = #tpu.core_type<tc>} {
    %c0 = arith.constant 0 : index
    %c0_0 = arith.constant 0 : index
    %0 = vector.load %arg0[%c0, %c0_0] : memref<8x128xf32, #tpu.memory_space<vmem>>, vector<1x128xf32>
    %c1 = arith.constant 1 : index
    %c0_1 = arith.constant 0 : index
    %1 = vector.load %arg0[%c1, %c0_1] : memref<8x128xf32, #tpu.memory_space<vmem>>, vector<1x128xf32>
    %c2 = arith.constant 2 : index
    %c0_2 = arith.constant 0 : index
    %2 = vector.load %arg0[%c2, %c0_2] : memref<8x128xf32, #tpu.memory_space<vmem>>, vector<1x128xf32>
    %c3 = arith.constant 3 : index
    %c0_3 = arith.constant 0 : index
    %3 = vector.load %arg0[%c3, %c0_3] : memref<8x128xf32, #tpu.memory_space<vmem>>, vector<1x128xf32>
    %c4 = arith.constant 4 : index
    %c0_4 = arith.constant 0 : index
    %4 = vector.load %arg0[%c4, %c0_4] : memref<8x128xf32, #tpu.memory_space<vmem>>, vector<1x128xf32>
    %cst = arith.constant 5.250000e+02 : f32
    %5 = vector.broadcast %cst : f32 to vector<1x128xf32>
    %6 = arith.mulf %5, %0 : vector<1x128xf32>
    %cst_5 = arith.constant 5.120000e+02 : f32
    %7 = vector.broadcast %cst_5 : f32 to vector<1x128xf32>
    %8 = arith.mulf %7, %2 : vector<1x128xf32>
    %9 = arith.addf %6, %8 : vector<1x128xf32>
    %cst_6 = arith.constant 5.250000e+02 : f32
    %10 = vector.broadcast %cst_6 : f32 to vector<1x128xf32>
    %11 = arith.mulf %10, %1 : vector<1x128xf32>
    %cst_7 = arith.constant 1.540000e+02 : f32
    %12 = vector.broadcast %cst_7 : f32 to vector<1x128xf32>
    %13 = arith.mulf %12, %2 : vector<1x128xf32>
    %14 = arith.addf %11, %13 : vector<1x128xf32>
    %15 = tpu.reciprocal %2 : vector<1x128xf32> -> vector<1x128xf32>
    %16 = arith.mulf %9, %15 : vector<1x128xf32>
    %17 = arith.mulf %14, %15 : vector<1x128xf32>
    %18 = arith.subf %16, %3 : vector<1x128xf32>
    %19 = arith.mulf %18, %18 : vector<1x128xf32>
    %20 = arith.subf %17, %4 : vector<1x128xf32>
    %21 = arith.mulf %20, %20 : vector<1x128xf32>
    %22 = arith.addf %19, %21 : vector<1x128xf32>
    %23 = vector.shape_cast %22 : vector<1x128xf32> to vector<1x1x128xf32>
    %cst_8 = arith.constant dense<0.000000e+00> : vector<1xf32>
    %24 = vector.multi_reduction <add>, %23, %cst_8 [1, 2] : vector<1x1x128xf32> to vector<1xf32>
    %25 = vector.shape_cast %24 : vector<1xf32> to vector<1x1x1xf32>
    %26 = vector.extract %25[0, 0, 0] : f32 from vector<1x1x1xf32>
    %cst_9 = arith.constant 0.000000e+00 : f32
    %cst_10 = arith.constant 5.000000e+01 : f32
    %27 = arith.maximumf %cst_9, %26 : f32
    %28 = arith.minimumf %cst_10, %27 : f32
    %c0_11 = arith.constant 0 : index
    %c0_12 = arith.constant 0 : index
    %29 = memref.load %arg1[%c0_11, %c0_12] : memref<1x1xf32, #tpu.memory_space<smem>>
    memref.store %28, %arg1[%c0_11, %c0_12] : memref<1x1xf32, #tpu.memory_space<smem>>
    return
  }
}

</mosaic_0001>

<llo_original>
// kernel: rep_criterion_pallas.1
$region0: #{rep_criterion_pallas.1}
  #allocation0 [shape = 'u32[]', space=smem, size = 0x4, offset = 0x4, fixed_abs, tag = 'smem constant byte address 0x4 - core index']
  #allocation1 [shape = 'u32[144,128]{1,0:T(1,128)}', space=vmem, size = 0x12000, scoped, tag = 'internal scratch']
  %s0 = inlined_call_operand.vmem [shape: f32[8,128], index: 0, kind: input, shape index: {}]
  %s1 = inlined_call_operand.hbm [shape: f32[1,1], index: 1, kind: output, shape index: {}]
  %s2 = sld [smem:[#allocation0]]
  $region14: #{rep_criterion_pallas.1} parent=0
    _
  %s4 = ssub.s32 1, %s2
  %s5 = scalar_select 0, %s4, %s2
  $region1: #{rep_criterion_pallas.1} parent=0
    #allocation2 [shape = 'u8[512]{0}', space=smem, size = 0x200, scoped, tag = 'output window, operand 0, single buffered']
    #allocation3 [shape = 's32[1]{0}', space=sflag, size = 0x4, scoped, tag = 'scoped memory for rep_criterion_pallas.1']
    %6 = vsyncpa [#allocation3], 0
    // Predicated region
    $region2: #{rep_criterion_pallas.1} parent=1 // pred_check
      _
    $region3: #{rep_criterion_pallas.1} parent=1 // pred_check_branch
      %8 = sbr.rel (0) target = $region5
    $region4: #{rep_criterion_pallas.1} parent=1 // pred_region
      _
    $region5: #{rep_criterion_pallas.1} parent=1 // pred_fallthru
      _
    %v9 = vld [vmem:[%s0] sm:$0x1]
    %v10 = vld [vmem:[%s0 + $0x1] sm:$0x1]
    %v11 = vld [vmem:[%s0 + $0x2] sm:$0x1]
    %v12 = vld [vmem:[%s0 + $0x3] sm:$0x1]
    %v13 = vld [vmem:[%s0 + $0x4] sm:$0x1]
    %v14 = vmul.f32 %v9, 525.0
    %v15 = vmul.f32 %v11, 512.0
    %v16 = vadd.f32 %v14, %v15
    %v17 = vmul.f32 %v10, 525.0
    %v18 = vmul.f32 %v11, 154.0
    %v19 = vadd.f32 %v17, %v18
    %v20 = vrcp.pop %v11
    %v21 = vmul.f32 %v16, %v20
    %v22 = vmul.f32 %v19, %v20
    %v23 = vsub.f32 %v21, %v12
    %v24 = vmul.f32 %v23, %v23
    %v25 = vsub.f32 %v22, %v13
    %v26 = vmul.f32 %v25, %v25
    %v27 = vadd.f32 %v24, %v26
    %vm28 = vcmask 1040384
    %v29 = vsel %vm28, %v27, 0.0
    %30 = vadd.xlane.f32.xlu0 %v29
    %v31 = vpop.xlane.xlu0 %30
    %v32 = vrot.slane %v31, 4
    %v33 = vadd.f32 %v31, %v32
    %v34 = vrot.slane %v33, 2
    %v35 = vadd.f32 %v33, %v34
    %v36 = vrot.slane %v35, 1
    %v37 = vadd.f32 %v35, %v36
    %s38 = vtos %v37
    %s39 = smax.f32 %s38, 0.0
    %s40 = smin.f32 %s39, 50.0
    %s41 = scalar_lea.smem [#allocation2], 0
    %42 = sst [smem:[%s41]] %s40
    // Predicated region
    $region6: #{rep_criterion_pallas.1} parent=1 // pred_check
      _
    $region7: #{rep_criterion_pallas.1} parent=1 // pred_check_branch
      %44 = sbr.rel (0) target = $region9
    $region8: #{rep_criterion_pallas.1} parent=1 // pred_region
      %s46 = ssub.s32 16, 16
      %47 = vsyncadd [#allocation3], %s46
      %50 = dma.smem_to_hbm [#allocation2], 16, %s1, [#allocation3]
    $region9: #{rep_criterion_pallas.1} parent=1 // pred_fallthru
      _
    // Predicated region
    $region10: #{rep_criterion_pallas.1} parent=1 // pred_check
      _
    $region11: #{rep_criterion_pallas.1} parent=1 // pred_check_branch
      %52 = sbr.rel (0) target = $region13
    $region12: #{rep_criterion_pallas.1} parent=1 // pred_region
      %53 = dma.done [#allocation3], 16
    $region13: #{rep_criterion_pallas.1} parent=1 // pred_fallthru
      _
    %54 = sfence
    %55 = vsyncpa [#allocation3], 1

</llo_original>
